<compile_context>
chip_gen: v7x
topology: tpu7x:2x2x1
jax: 0.10.0
libtpu: 0.0.40
codegen_flags: <defaults>
</compile_context>

<pallas_src>
import jax
import jax.numpy as jnp
from jax.experimental import pallas as pl
from jax.experimental.pallas import tpu as pltpu

D_IN = 32
D_HID = 64
PACK = 4            # logical rows packed per 128-lane register row
LN_EPS = 1e-5


def ffn_kernel(x_ref, segmean_ref, w1_ref, b1_ref, w2_ref, b2_ref, out_ref):
    # x_ref: (tm4, 128) tile -- each row holds 4 independent 32-feature rows.
    xin = x_ref[...]
    x = xin.astype(jnp.float32)                   # residual source (clone_x), f32
    x_bf = xin.astype(jnp.bfloat16)
    xsq_bf = (x * x).astype(jnp.bfloat16)
    seg = segmean_ref[...]                        # (128,128) block-diag ones/32, bf16

    # --- LayerNorm stats: mean and E[x^2]; the two matmuls are independent
    #     (var = E[x^2] - mean^2), so no MXU->VPU->MXU serialization ---
    mean = jnp.dot(x_bf, seg, preferred_element_type=jnp.float32)
    msq = jnp.dot(xsq_bf, seg, preferred_element_type=jnp.float32)
    var = jnp.maximum(msq - mean * mean, 0.0)
    xn = (x - mean) * jax.lax.rsqrt(var + LN_EPS)
    # (gamma/beta affine folded into w1_ref / b1_ref in the wrapper)

    # --- Linear(32,64) + ReLU (block-diagonal x4), bf16 operands, f32 accum ---
    h = jnp.dot(xn.astype(jnp.bfloat16), w1_ref[...],
                preferred_element_type=jnp.float32) + b1_ref[...]
    h = jnp.maximum(h, 0.0)

    # --- Linear(64,32); Dropout(p=0.1) is identity in eval ---
    y = jnp.dot(h.astype(jnp.bfloat16), w2_ref[...],
                preferred_element_type=jnp.float32) + b2_ref[...]

    # --- residual add in f32 ---
    out_ref[...] = (x + y).astype(out_ref.dtype)


def _pack_params(gamma, beta, w1, b1, w2, b2):
    """One-time param prep: fold LN affine, block-diag replicate x4, bf16 weights."""
    f32 = jnp.float32
    gamma = gamma.astype(f32)
    beta = beta.astype(f32)
    w1 = w1.astype(f32)
    b1 = b1.astype(f32)
    w2 = w2.astype(f32)
    b2 = b2.astype(f32)

    # Fold LayerNorm affine into the first linear.
    w1f = gamma[:, None] * w1                    # (32, 64)
    b1f = beta @ w1 + b1                         # (64,)

    eye = jnp.eye(PACK, dtype=f32)
    # Matmul operands in bf16 (f32 accumulation happens in-kernel); biases stay f32.
    w1_bd = jnp.kron(eye, w1f).astype(jnp.bfloat16)               # (128, 256)
    w2_bd = jnp.kron(eye, w2).astype(jnp.bfloat16)                # (256, 128)
    b1_bd = jnp.tile(b1f, (PACK,)).reshape(1, PACK * D_HID)       # (1, 256) f32
    b2_bd = jnp.tile(b2, (PACK,)).reshape(1, PACK * D_IN)         # (1, 128) f32

    # Segmented-mean matrix: block-diag of ones(32,32)/32 (1/32 exact in bf16).
    seg = jnp.kron(eye, jnp.full((D_IN, D_IN), 1.0 / D_IN, f32)).astype(jnp.bfloat16)
    return seg, w1_bd, b1_bd, w2_bd, b2_bd


def _reference(x, gamma, beta, w1, b1, w2, b2):
    """Pure-JAX f32 reference (also used for the rare ragged-row epilogue)."""
    mean = jnp.mean(x, axis=-1, keepdims=True)
    var = jnp.mean((x - mean) ** 2, axis=-1, keepdims=True)
    xn = (x - mean) * jax.lax.rsqrt(var + LN_EPS) * gamma + beta
    h = jnp.maximum(xn @ w1 + b1, 0.0)
    y = h @ w2 + b2
    return x + y


def fully_connected_output(x, gamma, beta, w1, b1, w2, b2, *, tile_rows=16384):
    """x: [batch, seq, 32] -> [batch, seq, 32] (dtype preserved)."""
    B, S, D = x.shape
    assert D == D_IN
    N = B * S
    x2 = x.reshape(N, D)

    rem = N % PACK
    n_main = N - rem
    Np4 = n_main // PACK

    seg, w1_bd, b1_bd, w2_bd, b2_bd = _pack_params(gamma, beta, w1, b1, w2, b2)

    DL = PACK * D_IN                             # 128 lanes
    DH = PACK * D_HID                            # 256

    if Np4 > 0:
        xp = x2[:n_main].reshape(Np4, DL)        # free row-major repack when rem == 0

        # Tile sizing: largest tile under all per-generation VMEM budgets
        # (tm4=4096 -> ~8.4 MiB incl. double buffers: fits v5e 16 MiB scoped,
        # v6e/v7x 32 MiB scoped), but always >=2 grid steps when Np4 > 8 so
        # the "parallel" grid axis can feed both v7x TensorCores.
        cap = max((tile_rows // PACK) // 8 * 8, 8)       # packed rows per tile
        if Np4 <= 8:
            tm4 = Np4                                    # full array -> single block
        else:
            half8 = ((pl.cdiv(Np4, 2) + 7) // 8) * 8
            tm4 = min(cap, half8)
        grid = (pl.cdiv(Np4, tm4),)                      # partial last block OK

        flops = 2 * Np4 * (2 * DL * DL + DL * DH + DH * DL)
        bytes_io = 2 * Np4 * DL * x.dtype.itemsize
        bytes_const = 2 * (seg.size + w1_bd.size + w2_bd.size) \
            + 4 * (b1_bd.size + b2_bd.size)
        cost = pl.CostEstimate(flops=int(flops),
                               transcendentals=int(Np4 * DL),
                               bytes_accessed=int(bytes_io + bytes_const))

        out_main = pl.pallas_call(
            ffn_kernel,
            out_shape=jax.ShapeDtypeStruct((Np4, DL), x.dtype),
            grid_spec=pltpu.PrefetchScalarGridSpec(
                num_scalar_prefetch=0,
                grid=grid,
                in_specs=[
                    pl.BlockSpec((tm4, DL), lambda i: (i, 0)),   # packed x tile
                    pl.BlockSpec((DL, DL), lambda i: (0, 0)),    # segment-mean (bf16)
                    pl.BlockSpec((DL, DH), lambda i: (0, 0)),    # W1 block-diag (bf16)
                    pl.BlockSpec((1, DH), lambda i: (0, 0)),     # b1 tiled (f32)
                    pl.BlockSpec((DH, DL), lambda i: (0, 0)),    # W2 block-diag (bf16)
                    pl.BlockSpec((1, DL), lambda i: (0, 0)),     # b2 tiled (f32)
                ],
                out_specs=pl.BlockSpec((tm4, DL), lambda i: (i, 0)),
            ),
            compiler_params=pltpu.CompilerParams(
                dimension_semantics=("parallel",)),
            cost_estimate=cost,
        )(xp, seg, w1_bd, b1_bd, w2_bd, b2_bd)
        out_main = out_main.reshape(n_main, D_IN)
    else:
        out_main = jnp.zeros((0, D_IN), x.dtype)

    if rem:
        # TODO(synk): rare ragged path (N % 4 != 0) runs the last <=3 rows in
        # plain JAX; the concatenate costs one extra pass over the output
        # (still cheaper than the old full-array jnp.pad of the input).
        tail = _reference(x2[n_main:].astype(jnp.float32),
                          gamma.astype(jnp.float32), beta.astype(jnp.float32),
                          w1.astype(jnp.float32), b1.astype(jnp.float32),
                          w2.astype(jnp.float32), b2.astype(jnp.float32))
        out2 = jnp.concatenate([out_main, tail.astype(x.dtype)], axis=0)
    else:
        out2 = out_main

    return out2.reshape(B, S, D)


def _init_params(key):
    """Deterministic init matching the PyTorch module's parameter shapes."""
    k1, k2, k3, k4 = jax.random.split(key, 4)
    # nn.Linear(32, 64): weight (64, 32), bias (64,). Stored as W1 = weight.T
    # (32, 64) so the kernel computes x @ W1 + b1 (same math as PyTorch).
    bound1 = 1.0 / jnp.sqrt(D_IN)
    w1 = jax.random.uniform(k1, (D_IN, D_HID), jnp.float32, -bound1, bound1)
    b1 = jax.random.uniform(k2, (D_HID,), jnp.float32, -bound1, bound1)
    # nn.Linear(64, 32): weight (32, 64), bias (32,). Stored as (64, 32).
    bound2 = 1.0 / jnp.sqrt(D_HID)
    w2 = jax.random.uniform(k3, (D_HID, D_IN), jnp.float32, -bound2, bound2)
    b2 = jax.random.uniform(k4, (D_IN,), jnp.float32, -bound2, bound2)
    # nn.LayerNorm(32): gamma=1, beta=0 at init; use non-trivial values so the
    # affine fold is actually exercised.
    gamma = 1.0 + 0.1 * jax.random.normal(k1, (D_IN,), jnp.float32)
    beta = 0.1 * jax.random.normal(k2, (D_IN,), jnp.float32)
    return gamma, beta, w1, b1, w2, b2


if __name__ == "__main__":
    key = jax.random.PRNGKey(0)
    kx, kp = jax.random.split(key)
    batch, seq = 2, 8
    x = jax.random.normal(kx, (batch, seq, D_IN), jnp.float32)
    gamma, beta, w1, b1, w2, b2 = _init_params(kp)

    out = fully_connected_output(x, gamma, beta, w1, b1, w2, b2)
    out = jax.block_until_ready(out)

    ref = _reference(x, gamma, beta, w1, b1, w2, b2)
    assert out.shape == x.shape
    # bf16 matmul operands (f32 accumulation) vs the pure-f32 reference:
    # expected max abs error ~1e-2 -> 3e-2 tolerance still catches structural bugs.
    assert jnp.allclose(out, ref, atol=3e-2, rtol=3e-2), "mismatch vs reference"
    print("KERNEL_OK")
</pallas_src>

<mosaic_0001>
module attributes {stable_mosaic.version = 11 : i64} {
  func.func @ffn_kernel(%arg0: i32, %arg1: memref<4x128xf32, #tpu.memory_space<vmem>>, %arg2: memref<128x128xbf16, #tpu.memory_space<vmem>>, %arg3: memref<128x256xbf16, #tpu.memory_space<vmem>>, %arg4: memref<1x256xf32, #tpu.memory_space<vmem>>, %arg5: memref<256x128xbf16, #tpu.memory_space<vmem>>, %arg6: memref<1x128xf32, #tpu.memory_space<vmem>>, %arg7: memref<4x128xf32, #tpu.memory_space<vmem>>) attributes {dimension_semantics = [#tpu.dimension_semantics<parallel>], iteration_bounds = array<i64: 1>, scalar_prefetch = 0 : i64, scratch_operands = 0 : i64, tpu.core_type = #tpu.core_type<tc>, window_params = [{transform_indices = @transform_0, window_bounds = array<i64: 4, 128>}, {pipeline_mode = #tpu.pipeline_mode<synchronous>, transform_indices = @transform_1, window_bounds = array<i64: 128, 128>}, {pipeline_mode = #tpu.pipeline_mode<synchronous>, transform_indices = @transform_2, window_bounds = array<i64: 128, 256>}, {pipeline_mode = #tpu.pipeline_mode<synchronous>, transform_indices = @transform_3, window_bounds = array<i64: 1, 256>}, {pipeline_mode = #tpu.pipeline_mode<synchronous>, transform_indices = @transform_4, window_bounds = array<i64: 256, 128>}, {pipeline_mode = #tpu.pipeline_mode<synchronous>, transform_indices = @transform_5, window_bounds = array<i64: 1, 128>}, {transform_indices = @transform_6, window_bounds = array<i64: 4, 128>}]} {
    %c0 = arith.constant 0 : index
    %c0_0 = arith.constant 0 : index
    %0 = vector.load %arg1[%c0, %c0_0] : memref<4x128xf32, #tpu.memory_space<vmem>>, vector<4x128xf32>
    %1 = arith.truncf %0 : vector<4x128xf32> to vector<4x128xbf16>
    %2 = arith.mulf %0, %0 : vector<4x128xf32>
    %3 = arith.truncf %2 : vector<4x128xf32> to vector<4x128xbf16>
    %c0_1 = arith.constant 0 : index
    %c0_2 = arith.constant 0 : index
    %4 = vector.load %arg2[%c0_1, %c0_2] : memref<128x128xbf16, #tpu.memory_space<vmem>>, vector<128x128xbf16>
    %cst = arith.constant dense<0.000000e+00> : vector<4x128xf32>
    %5 = tpu.matmul %1, %4, %cst {dimension_numbers = #tpu.dot_dimension_numbers<[1], [0], [0], [1], [0, 0, 1, 1], [], []>} : vector<4x128xbf16>, vector<128x128xbf16>, vector<4x128xf32> -> vector<4x128xf32>
    %cst_3 = arith.constant dense<0.000000e+00> : vector<4x128xf32>
    %6 = tpu.matmul %3, %4, %cst_3 {dimension_numbers = #tpu.dot_dimension_numbers<[1], [0], [0], [1], [0, 0, 1, 1], [], []>} : vector<4x128xbf16>, vector<128x128xbf16>, vector<4x128xf32> -> vector<4x128xf32>
    %7 = arith.mulf %5, %5 : vector<4x128xf32>
    %8 = arith.subf %6, %7 : vector<4x128xf32>
    %cst_4 = arith.constant 0.000000e+00 : f32
    %9 = vector.broadcast %cst_4 : f32 to vector<4x128xf32>
    %10 = arith.maximumf %8, %9 : vector<4x128xf32>
    %11 = arith.subf %0, %5 : vector<4x128xf32>
    %cst_5 = arith.constant 9.99999974E-6 : f32
    %12 = vector.broadcast %cst_5 : f32 to vector<4x128xf32>
    %13 = arith.addf %10, %12 : vector<4x128xf32>
    %14 = math.rsqrt %13 : vector<4x128xf32>
    %15 = arith.mulf %11, %14 : vector<4x128xf32>
    %16 = arith.truncf %15 : vector<4x128xf32> to vector<4x128xbf16>
    %c0_6 = arith.constant 0 : index
    %c0_7 = arith.constant 0 : index
    %17 = vector.load %arg3[%c0_6, %c0_7] : memref<128x256xbf16, #tpu.memory_space<vmem>>, vector<128x256xbf16>
    %cst_8 = arith.constant dense<0.000000e+00> : vector<4x256xf32>
    %18 = tpu.matmul %16, %17, %cst_8 {dimension_numbers = #tpu.dot_dimension_numbers<[1], [0], [0], [1], [0, 0, 1, 1], [], []>} : vector<4x128xbf16>, vector<128x256xbf16>, vector<4x256xf32> -> vector<4x256xf32>
    %c0_9 = arith.constant 0 : index
    %c0_10 = arith.constant 0 : index
    %19 = vector.load %arg4[%c0_9, %c0_10] : memref<1x256xf32, #tpu.memory_space<vmem>>, vector<1x256xf32>
    %20 = vector.broadcast %19 : vector<1x256xf32> to vector<4x256xf32>
    %21 = arith.addf %18, %20 : vector<4x256xf32>
    %cst_11 = arith.constant 0.000000e+00 : f32
    %22 = vector.broadcast %cst_11 : f32 to vector<4x256xf32>
    %23 = arith.maximumf %21, %22 : vector<4x256xf32>
    %24 = arith.truncf %23 : vector<4x256xf32> to vector<4x256xbf16>
    %c0_12 = arith.constant 0 : index
    %c0_13 = arith.constant 0 : index
    %25 = vector.load %arg5[%c0_12, %c0_13] : memref<256x128xbf16, #tpu.memory_space<vmem>>, vector<256x128xbf16>
    %cst_14 = arith.constant dense<0.000000e+00> : vector<4x128xf32>
    %26 = tpu.matmul %24, %25, %cst_14 {dimension_numbers = #tpu.dot_dimension_numbers<[1], [0], [0], [1], [0, 0, 1, 1], [], []>} : vector<4x256xbf16>, vector<256x128xbf16>, vector<4x128xf32> -> vector<4x128xf32>
    %c0_15 = arith.constant 0 : index
    %c0_16 = arith.constant 0 : index
    %27 = vector.load %arg6[%c0_15, %c0_16] : memref<1x128xf32, #tpu.memory_space<vmem>>, vector<1x128xf32>
    %28 = vector.broadcast %27 : vector<1x128xf32> to vector<4x128xf32>
    %29 = arith.addf %26, %28 : vector<4x128xf32>
    %30 = arith.addf %0, %29 : vector<4x128xf32>
    %c0_17 = arith.constant 0 : index
    %c0_18 = arith.constant 0 : index
    %31 = vector.load %arg7[%c0_17, %c0_18] : memref<4x128xf32, #tpu.memory_space<vmem>>, vector<4x128xf32>
    tpu.vector_store %arg7[%c0_17, %c0_18], %30 {strides = array<i32>} : memref<4x128xf32, #tpu.memory_space<vmem>>, vector<4x128xf32>,
    return
  }
  func.func @transform_0(%arg0: i32) -> (i32, i32) {
    %c0_i32 = arith.constant 0 : i32
    %c0_i32_0 = arith.constant 0 : i32
    return %arg0, %c0_i32 : i32, i32
  }
  func.func @transform_1(%arg0: i32) -> (i32, i32) {
    %c0_i32 = arith.constant 0 : i32
    %c0_i32_0 = arith.constant 0 : i32
    %c0_i32_1 = arith.constant 0 : i32
    return %c0_i32, %c0_i32_0 : i32, i32
  }
  func.func @transform_2(%arg0: i32) -> (i32, i32) {
    %c0_i32 = arith.constant 0 : i32
    %c0_i32_0 = arith.constant 0 : i32
    %c0_i32_1 = arith.constant 0 : i32
    return %c0_i32, %c0_i32_0 : i32, i32
  }
  func.func @transform_3(%arg0: i32) -> (i32, i32) {
    %c0_i32 = arith.constant 0 : i32
    %c0_i32_0 = arith.constant 0 : i32
    %c0_i32_1 = arith.constant 0 : i32
    return %c0_i32, %c0_i32_0 : i32, i32
  }
  func.func @transform_4(%arg0: i32) -> (i32, i32) {
    %c0_i32 = arith.constant 0 : i32
    %c0_i32_0 = arith.constant 0 : i32
    %c0_i32_1 = arith.constant 0 : i32
    return %c0_i32, %c0_i32_0 : i32, i32
  }
  func.func @transform_5(%arg0: i32) -> (i32, i32) {
    %c0_i32 = arith.constant 0 : i32
    %c0_i32_0 = arith.constant 0 : i32
    %c0_i32_1 = arith.constant 0 : i32
    return %c0_i32, %c0_i32_0 : i32, i32
  }
  func.func @transform_6(%arg0: i32) -> (i32, i32) {
    %c0_i32 = arith.constant 0 : i32
    %c0_i32_0 = arith.constant 0 : i32
    return %arg0, %c0_i32 : i32, i32
  }
}

</mosaic_0001>

<llo_original>
// kernel: tpu_custom_call.1
$region0: #{tpu_custom_call.1}
  #allocation0 [shape = 'u32[]', space=smem, size = 0x4, offset = 0x4, fixed_abs, tag = 'smem constant byte address 0x4 - core index']
  #allocation1 [shape = 'u32[144,128]{1,0:T(1,128)}', space=vmem, size = 0x12000, scoped, tag = 'internal scratch']
  %s0 = inlined_call_operand.hbm [shape: f32[4,128], index: 0, kind: input, shape index: {}]
  %s1 = inlined_call_operand.hbm [shape: bf16[128,128], index: 1, kind: input, shape index: {}]
  %s2 = inlined_call_operand.hbm [shape: bf16[128,256], index: 2, kind: input, shape index: {}]
  %s3 = inlined_call_operand.vmem [shape: f32[1,256], index: 3, kind: input, shape index: {}]
  %s4 = inlined_call_operand.hbm [shape: bf16[256,128], index: 4, kind: input, shape index: {}]
  %s5 = inlined_call_operand.vmem [shape: f32[1,128], index: 5, kind: input, shape index: {}]
  %s6 = inlined_call_operand.hbm [shape: f32[4,128], index: 6, kind: output, shape index: {}]
  %s7 = sld [smem:[#allocation0]]
  $region50: #{tpu_custom_call.1} parent=0
    _
  %s9 = ssub.s32 1, %s7
  %s10 = scalar_select 0, %s9, %s7
  $region1: #{tpu_custom_call.1} parent=0
    #allocation2 [shape = 'u8[2048]{0}', space=vmem, size = 0x800, scoped, tag = 'input window, operand 0, single buffered']
    #allocation3 [shape = 's32[1]{0}', space=sflag, size = 0x4, scoped, tag = 'scoped memory for tpu_custom_call.1']
    #allocation4 [shape = 's32[1]{0}', space=sflag, size = 0x4, scoped, tag = 'scoped memory for tpu_custom_call.1']
    #allocation5 [shape = 'u8[32768]{0}', space=vmem, size = 0x8000, scoped, tag = 'input window, operand 1, single buffered']
    #allocation6 [shape = 's32[1]{0}', space=sflag, size = 0x4, scoped, tag = 'scoped memory for tpu_custom_call.1']
    #allocation7 [shape = 'u8[65536]{0}', space=vmem, size = 0x10000, scoped, tag = 'input window, operand 2, single buffered']
    #allocation8 [shape = 'u8[65536]{0}', space=vmem, size = 0x10000, scoped, tag = 'input window, operand 4, single buffered']
    #allocation9 [shape = 's32[1]{0}', space=sflag, size = 0x4, scoped, tag = 'scoped memory for tpu_custom_call.1']
    #allocation10 [shape = 'u8[2048]{0}', space=vmem, size = 0x800, scoped, tag = 'output window, operand 0, single buffered']
    %11 = vsyncpa [#allocation3], 0
    %12 = vsyncpa [#allocation6], 0
    %13 = vsyncpa [#allocation9], 0
    %14 = vsyncpa [#allocation4], 0
    // Predicated region
    $region2: #{tpu_custom_call.1} parent=1 // pred_check
      _
    $region3: #{tpu_custom_call.1} parent=1 // pred_check_branch
      %16 = sbr.rel (0) target = $region5
    $region4: #{tpu_custom_call.1} parent=1 // pred_region
      %s18 = ssub.s32 64, 64
      %19 = vsyncadd [#allocation3], %s18
      %s21 = sshll.u32 [#allocation2], 4
      %s22 = int_to_ptr.vmem [resolvable:$true] %s21
      %24 = dma.hbm_to_vmem [thread:$0]  %s0, 64, %s22, [#allocation3]
    $region5: #{tpu_custom_call.1} parent=1 // pred_fallthru
      _
    // Predicated region
    $region6: #{tpu_custom_call.1} parent=1 // pred_check
      _
    $region7: #{tpu_custom_call.1} parent=1 // pred_check_branch
      %26 = sbr.rel (0) target = $region9
    $region8: #{tpu_custom_call.1} parent=1 // pred_region
      %s28 = ssub.s32 1024, 1024
      %29 = vsyncadd [#allocation6], %s28
      %s30 = sshll.u32 [#allocation5], 4
      %s31 = int_to_ptr.vmem [resolvable:$true] %s30
      %36 = dma.hbm_to_vmem [thread:$0]  %s1, 1024, %s31, [#allocation6], 64, 64, 4
    $region9: #{tpu_custom_call.1} parent=1 // pred_fallthru
      _
    // Predicated region
    $region10: #{tpu_custom_call.1} parent=1 // pred_check
      _
    $region11: #{tpu_custom_call.1} parent=1 // pred_check_branch
      %38 = sbr.rel (0) target = $region13
    $region12: #{tpu_custom_call.1} parent=1 // pred_region
      %s40 = ssub.s32 2048, 2048
      %41 = vsyncadd [#allocation6], %s40
      %s42 = sshll.u32 [#allocation7], 4
      %s43 = int_to_ptr.vmem [resolvable:$true] %s42
      %48 = dma.hbm_to_vmem [thread:$0]  %s2, 2048, %s43, [#allocation6], 128, 128, 8
    $region13: #{tpu_custom_call.1} parent=1 // pred_fallthru
      _
    // Predicated region
    $region14: #{tpu_custom_call.1} parent=1 // pred_check
      _
    $region15: #{tpu_custom_call.1} parent=1 // pred_check_branch
      %50 = sbr.rel (0) target = $region17
    $region16: #{tpu_custom_call.1} parent=1 // pred_region
      _
    $region17: #{tpu_custom_call.1} parent=1 // pred_fallthru
      _
    // Predicated region
    $region18: #{tpu_custom_call.1} parent=1 // pred_check
      _
    $region19: #{tpu_custom_call.1} parent=1 // pred_check_branch
      %52 = sbr.rel (0) target = $region21
    $region20: #{tpu_custom_call.1} parent=1 // pred_region
      %s54 = ssub.s32 2048, 2048
      %55 = vsyncadd [#allocation9], %s54
      %s56 = sshll.u32 [#allocation8], 4
      %s57 = int_to_ptr.vmem [resolvable:$true] %s56
      %62 = dma.hbm_to_vmem [thread:$0]  %s4, 2048, %s57, [#allocation9], 64, 64, 4
    $region21: #{tpu_custom_call.1} parent=1 // pred_fallthru
      _
    // Predicated region
    $region22: #{tpu_custom_call.1} parent=1 // pred_check
      _
    $region23: #{tpu_custom_call.1} parent=1 // pred_check_branch
      %64 = sbr.rel (0) target = $region25
    $region24: #{tpu_custom_call.1} parent=1 // pred_region
      _
    $region25: #{tpu_custom_call.1} parent=1 // pred_fallthru
      _
    // Predicated region
    $region26: #{tpu_custom_call.1} parent=1 // pred_check
      _
    $region27: #{tpu_custom_call.1} parent=1 // pred_check_branch
      %66 = sbr.rel (0) target = $region29
    $region28: #{tpu_custom_call.1} parent=1 // pred_region
      %67 = dma.done [#allocation3], 64
    $region29: #{tpu_custom_call.1} parent=1 // pred_fallthru
      _
    // Predicated region
    $region30: #{tpu_custom_call.1} parent=1 // pred_check
      _
    $region31: #{tpu_custom_call.1} parent=1 // pred_check_branch
      %69 = sbr.rel (0) target = $region33
    $region32: #{tpu_custom_call.1} parent=1 // pred_region
      %70 = dma.done [#allocation6], 1024
    $region33: #{tpu_custom_call.1} parent=1 // pred_fallthru
      _
    // Predicated region
    $region34: #{tpu_custom_call.1} parent=1 // pred_check
      _
    $region35: #{tpu_custom_call.1} parent=1 // pred_check_branch
      %72 = sbr.rel (0) target = $region37
    $region36: #{tpu_custom_call.1} parent=1 // pred_region
      %73 = dma.done [#allocation6], 2048
    $region37: #{tpu_custom_call.1} parent=1 // pred_fallthru
      _
    // Predicated region
    $region38: #{tpu_custom_call.1} parent=1 // pred_check
      _
    $region39: #{tpu_custom_call.1} parent=1 // pred_check_branch
      %75 = sbr.rel (0) target = $region41
    $region40: #{tpu_custom_call.1} parent=1 // pred_region
      %76 = dma.done [#allocation9], 2048
    $region41: #{tpu_custom_call.1} parent=1 // pred_fallthru
      _
    %v78 = vld [vmem:[#allocation2] sm:$0xf]
    %v79 = vpack.c.bf16 %v78, %v78
    %v80 = vmul.f32 %v78, %v78
    %v81 = vpack.c.bf16 %v80, %v80
    %v82 = vld [vmem:[#allocation5] sm:$0xf]
    %v83 = vld [vmem:[#allocation5 + $0x4] sm:$0xf]
    %v84 = vld [vmem:[#allocation5 + $0x8] sm:$0xf]
    %v85 = vld [vmem:[#allocation5 + $0xc] sm:$0xf]
    %v86 = vld [vmem:[#allocation5 + $0x10] sm:$0xf]
    %v87 = vld [vmem:[#allocation5 + $0x14] sm:$0xf]
    %v88 = vld [vmem:[#allocation5 + $0x18] sm:$0xf]
    %v89 = vld [vmem:[#allocation5 + $0x1c] sm:$0xf]
    %v90 = vld [vmem:[#allocation5 + $0x20] sm:$0xf]
    %v91 = vld [vmem:[#allocation5 + $0x24] sm:$0xf]
    %v92 = vld [vmem:[#allocation5 + $0x28] sm:$0xf]
    %v93 = vld [vmem:[#allocation5 + $0x2c] sm:$0xf]
    %v94 = vld [vmem:[#allocation5 + $0x30] sm:$0xf]
    %v95 = vld [vmem:[#allocation5 + $0x34] sm:$0xf]
    %v96 = vld [vmem:[#allocation5 + $0x38] sm:$0xf]
    %v97 = vld [vmem:[#allocation5 + $0x3c] sm:$0xf]
    %v114 = vunpack.c.l.b16 %v82
    %v115 = vunpack.c.l.b16 %v83
    %v116 = vunpack.c.l.b16 %v84
    %v117 = vunpack.c.l.b16 %v85
    %v118 = vunpack.c.l.b16 %v86
    %v119 = vunpack.c.l.b16 %v87
    %v120 = vunpack.c.l.b16 %v88
    %v121 = vunpack.c.l.b16 %v89
    %v122 = vunpack.c.l.b16 %v90
    %v123 = vunpack.c.l.b16 %v91
    %v124 = vunpack.c.l.b16 %v92
    %v125 = vunpack.c.l.b16 %v93
    %v126 = vunpack.c.l.b16 %v94
    %v127 = vunpack.c.l.b16 %v95
    %v128 = vunpack.c.l.b16 %v96
    %v129 = vunpack.c.l.b16 %v97
    %v130 = vpack.c.b16 %v115, %v114
    %v131 = vpack.c.b16 %v117, %v116
    %v132 = vpack.c.b16 %v119, %v118
    %v133 = vpack.c.b16 %v121, %v120
    %v134 = vpack.c.b16 %v123, %v122
    %v135 = vpack.c.b16 %v125, %v124
    %v136 = vpack.c.b16 %v127, %v126
    %v137 = vpack.c.b16 %v129, %v128
    %146 = vmatprep.subr.bf16.mxu0 0
    %147 = vmatpush1.bf16.msra.mxu0 %v130
    %148 = vmatprep.subr.bf16.mxu0 0
    %149 = vmatpush1.bf16.msra.mxu0 %v131
    %150 = vmatprep.subr.bf16.mxu0 0
    %151 = vmatpush1.bf16.msra.mxu0 %v132
    %152 = vmatprep.subr.bf16.mxu0 0
    %153 = vmatpush1.bf16.msra.mxu0 %v133
    %154 = vmatprep.subr.bf16.mxu0 0
    %155 = vmatpush1.bf16.msra.mxu0 %v134
    %156 = vmatprep.subr.bf16.mxu0 0
    %157 = vmatpush1.bf16.msra.mxu0 %v135
    %158 = vmatprep.subr.bf16.mxu0 0
    %159 = vmatpush1.bf16.msra.mxu0 %v136
    %160 = vmatprep.subr.bf16.mxu0 0
    %161 = vmatpush1.bf16.msra.mxu0 %v137
    %162 = vmatprep.subr.bf16.mxu0 0
    %163 = vmatpush1.bf16.msra.mxu0 0
    %164 = vmatprep.subr.bf16.mxu0 0
    %165 = vmatpush1.bf16.msra.mxu0 0
    %166 = vmatprep.subr.bf16.mxu0 0
    %167 = vmatpush1.bf16.msra.mxu0 0
    %168 = vmatprep.subr.bf16.mxu0 0
    %169 = vmatpush1.bf16.msra.mxu0 0
    %170 = vmatprep.subr.bf16.mxu0 0
    %171 = vmatpush1.bf16.msra.mxu0 0
    %172 = vmatprep.subr.bf16.mxu0 0
    %173 = vmatpush1.bf16.msra.mxu0 0
    %174 = vmatprep.subr.bf16.mxu0 0
    %175 = vmatpush1.bf16.msra.mxu0 0
    %176 = vmatprep.subr.bf16.mxu0 0
    %177 = vmatpush1.bf16.msra.mxu0 0
    %178 = vmatprep.mubr.bf16.mxu0 0
    %179 = vmatmul.mubr.bf16.gmra.mrb[0].mxu0 %v79
    %v180 = vpop.f32.mrb[0].mxu0
    %v181 = vadd.f32 0.0, %v180
    %v182 = vpop.f32.mrb[0].mxu0
    %v183 = vpop.f32.mrb[0].mxu0
    %v184 = vpop.f32.mrb[0].mxu0
    %185 = vdwg.mxu0
    %186 = vmatprep.subr.bf16.mxu0 0
    %187 = vmatpush1.bf16.msra.mxu0 %v130
    %188 = vmatprep.subr.bf16.mxu0 0
    %189 = vmatpush1.bf16.msra.mxu0 %v131
    %190 = vmatprep.subr.bf16.mxu0 0
    %191 = vmatpush1.bf16.msra.mxu0 %v132
    %192 = vmatprep.subr.bf16.mxu0 0
    %193 = vmatpush1.bf16.msra.mxu0 %v133
    %194 = vmatprep.subr.bf16.mxu0 0
    %195 = vmatpush1.bf16.msra.mxu0 %v134
    %196 = vmatprep.subr.bf16.mxu0 0
    %197 = vmatpush1.bf16.msra.mxu0 %v135
    %198 = vmatprep.subr.bf16.mxu0 0
    %199 = vmatpush1.bf16.msra.mxu0 %v136
    %200 = vmatprep.subr.bf16.mxu0 0
    %201 = vmatpush1.bf16.msra.mxu0 %v137
    %202 = vmatprep.subr.bf16.mxu0 0
    %203 = vmatpush1.bf16.msra.mxu0 0
    %204 = vmatprep.subr.bf16.mxu0 0
    %205 = vmatpush1.bf16.msra.mxu0 0
    %206 = vmatprep.subr.bf16.mxu0 0
    %207 = vmatpush1.bf16.msra.mxu0 0
    %208 = vmatprep.subr.bf16.mxu0 0
    %209 = vmatpush1.bf16.msra.mxu0 0
    %210 = vmatprep.subr.bf16.mxu0 0
    %211 = vmatpush1.bf16.msra.mxu0 0
    %212 = vmatprep.subr.bf16.mxu0 0
    %213 = vmatpush1.bf16.msra.mxu0 0
    %214 = vmatprep.subr.bf16.mxu0 0
    %215 = vmatpush1.bf16.msra.mxu0 0
    %216 = vmatprep.subr.bf16.mxu0 0
    %217 = vmatpush1.bf16.msra.mxu0 0
    %218 = vmatprep.mubr.bf16.mxu0 0
    %219 = vmatmul.mubr.bf16.gmra.mrb[0].mxu0 %v81
    %v220 = vpop.f32.mrb[0].mxu0
    %v221 = vadd.f32 0.0, %v220
    %v222 = vpop.f32.mrb[0].mxu0
    %v223 = vpop.f32.mrb[0].mxu0
    %v224 = vpop.f32.mrb[0].mxu0
    %225 = vdwg.mxu0
    %v226 = vmul.f32 %v181, %v181
    %v227 = vsub.f32 %v221, %v226
    %v228 = vmax.f32 %v227, 0.0
    %v229 = vsub.f32 %v78, %v181
    %v230 = vadd.f32 %v228, 1e-05
    %v231 = vrsqrt.pop %v230
    %v232 = vmul.f32 %v229, %v231
    %v233 = vpack.c.bf16 %v232, %v232
    %v234 = vld [vmem:[#allocation7] sm:$0xff]
    %v235 = vld [vmem:[#allocation7 + $0x8] sm:$0xff]
    %v236 = vld [vmem:[#allocation7 + $0x10] sm:$0xff]
    %v237 = vld [vmem:[#allocation7 + $0x18] sm:$0xff]
    %v238 = vld [vmem:[#allocation7 + $0x20] sm:$0xff]
    %v239 = vld [vmem:[#allocation7 + $0x28] sm:$0xff]
    %v240 = vld [vmem:[#allocation7 + $0x30] sm:$0xff]
    %v241 = vld [vmem:[#allocation7 + $0x38] sm:$0xff]
    %v242 = vld [vmem:[#allocation7 + $0x40] sm:$0xff]
    %v243 = vld [vmem:[#allocation7 + $0x48] sm:$0xff]
    %v244 = vld [vmem:[#allocation7 + $0x50] sm:$0xff]
    %v245 = vld [vmem:[#allocation7 + $0x58] sm:$0xff]
    %v246 = vld [vmem:[#allocation7 + $0x60] sm:$0xff]
    %v247 = vld [vmem:[#allocation7 + $0x68] sm:$0xff]
    %v248 = vld [vmem:[#allocation7 + $0x70] sm:$0xff]
    %v249 = vld [vmem:[#allocation7 + $0x78] sm:$0xff]
    %v250 = vld [vmem:[%s3] sm:$0x3]
    %v252 = vlaneseq
    %v253 = vshrl.u32 %v252, 7
    %v254 = vsub.s32 0, %v253
    %v255 = vrot.slane %v250, %v254
    %v256 = vlaneseq
    %v257 = vshrl.u32 %v256, 7
    %v258 = vsub.s32 1, %v257
    %v259 = vrot.slane %v250, %v258
    %v278 = vunpack.c.l.b16 %v234
    %v279 = vunpack.c.h.b16 %v234
    %v280 = vunpack.c.l.b16 %v235
    %v281 = vunpack.c.h.b16 %v235
    %v282 = vunpack.c.l.b16 %v236
    %v283 = vunpack.c.h.b16 %v236
    %v284 = vunpack.c.l.b16 %v237
    %v285 = vunpack.c.h.b16 %v237
    %v286 = vunpack.c.l.b16 %v238
    %v287 = vunpack.c.h.b16 %v238
    %v288 = vunpack.c.l.b16 %v239
    %v289 = vunpack.c.h.b16 %v239
    %v290 = vunpack.c.l.b16 %v240
    %v291 = vunpack.c.h.b16 %v240
    %v292 = vunpack.c.l.b16 %v241
    %v293 = vunpack.c.h.b16 %v241
    %v294 = vunpack.c.l.b16 %v242
    %v295 = vunpack.c.h.b16 %v242
    %v296 = vunpack.c.l.b16 %v243
    %v297 = vunpack.c.h.b16 %v243
    %v298 = vunpack.c.l.b16 %v244
    %v299 = vunpack.c.h.b16 %v244
    %v300 = vunpack.c.l.b16 %v245
    %v301 = vunpack.c.h.b16 %v245
    %v302 = vunpack.c.l.b16 %v246
    %v303 = vunpack.c.h.b16 %v246
    %v304 = vunpack.c.l.b16 %v247
    %v305 = vunpack.c.h.b16 %v247
    %v306 = vunpack.c.l.b16 %v248
    %v307 = vunpack.c.h.b16 %v248
    %v308 = vunpack.c.l.b16 %v249
    %v309 = vunpack.c.h.b16 %v249
    %v310 = vpack.c.b16 %v280, %v278
    %v311 = vpack.c.b16 %v281, %v279
    %v312 = vpack.c.b16 %v284, %v282
    %v313 = vpack.c.b16 %v285, %v283
    %v314 = vpack.c.b16 %v288, %v286
    %v315 = vpack.c.b16 %v289, %v287
    %v316 = vpack.c.b16 %v292, %v290
    %v317 = vpack.c.b16 %v293, %v291
    %v318 = vpack.c.b16 %v296, %v294
    %v319 = vpack.c.b16 %v297, %v295
    %v320 = vpack.c.b16 %v300, %v298
    %v321 = vpack.c.b16 %v301, %v299
    %v322 = vpack.c.b16 %v304, %v302
    %v323 = vpack.c.b16 %v305, %v303
    %v324 = vpack.c.b16 %v308, %v306
    %v325 = vpack.c.b16 %v309, %v307
    %342 = vmatprep.subr.bf16.mxu0 %v311
    %343 = vmatpush1.bf16.msra.mxu0 %v310
    %344 = vmatprep.subr.bf16.mxu0 %v313
    %345 = vmatpush1.bf16.msra.mxu0 %v312
    %346 = vmatprep.subr.bf16.mxu0 %v315
    %347 = vmatpush1.bf16.msra.mxu0 %v314
    %348 = vmatprep.subr.bf16.mxu0 %v317
    %349 = vmatpush1.bf16.msra.mxu0 %v316
    %350 = vmatprep.subr.bf16.mxu0 %v319
    %351 = vmatpush1.bf16.msra.mxu0 %v318
    %352 = vmatprep.subr.bf16.mxu0 %v321
    %353 = vmatpush1.bf16.msra.mxu0 %v320
    %354 = vmatprep.subr.bf16.mxu0 %v323
    %355 = vmatpush1.bf16.msra.mxu0 %v322
    %356 = vmatprep.subr.bf16.mxu0 %v325
    %357 = vmatpush1.bf16.msra.mxu0 %v324
    %358 = vmatprep.subr.bf16.mxu0 0
    %359 = vmatpush1.bf16.msra.mxu0 0
    %360 = vmatprep.subr.bf16.mxu0 0
    %361 = vmatpush1.bf16.msra.mxu0 0
    %362 = vmatprep.subr.bf16.mxu0 0
    %363 = vmatpush1.bf16.msra.mxu0 0
    %364 = vmatprep.subr.bf16.mxu0 0
    %365 = vmatpush1.bf16.msra.mxu0 0
    %366 = vmatprep.subr.bf16.mxu0 0
    %367 = vmatpush1.bf16.msra.mxu0 0
    %368 = vmatprep.subr.bf16.mxu0 0
    %369 = vmatpush1.bf16.msra.mxu0 0
    %370 = vmatprep.subr.bf16.mxu0 0
    %371 = vmatpush1.bf16.msra.mxu0 0
    %372 = vmatprep.subr.bf16.mxu0 0
    %373 = vmatpush1.bf16.msra.mxu0 0
    %374 = vmatprep.mubr.bf16.mxu0 0
    %375 = vmatmul.mubr.bf16.gmra.mrb[0].mxu0 %v233
    %v376 = vpop.f32.mrb[0].mxu0
    %v377 = vadd.f32 %v255, %v376
    %v378 = vpop.f32.mrb[0].mxu0
    %v379 = vadd.f32 %v259, %v378
    %v380 = vpop.f32.mrb[0].mxu0
    %v381 = vpop.f32.mrb[0].mxu0
    %382 = vdwg.mxu0
    %v383 = vmax.f32 %v377, 0.0
    %v384 = vmax.f32 %v379, 0.0
    %v385 = vpack.c.bf16 %v383, %v383
    %v386 = vpack.c.bf16 %v384, %v384
    %v387 = vld [vmem:[#allocation8] sm:$0xf]
    %v388 = vld [vmem:[#allocation8 + $0x4] sm:$0xf]
    %v389 = vld [vmem:[#allocation8 + $0x8] sm:$0xf]
    %v390 = vld [vmem:[#allocation8 + $0xc] sm:$0xf]
    %v391 = vld [vmem:[#allocation8 + $0x10] sm:$0xf]
    %v392 = vld [vmem:[#allocation8 + $0x14] sm:$0xf]
    %v393 = vld [vmem:[#allocation8 + $0x18] sm:$0xf]
    %v394 = vld [vmem:[#allocation8 + $0x1c] sm:$0xf]
    %v395 = vld [vmem:[#allocation8 + $0x20] sm:$0xf]
    %v396 = vld [vmem:[#allocation8 + $0x24] sm:$0xf]
    %v397 = vld [vmem:[#allocation8 + $0x28] sm:$0xf]
    %v398 = vld [vmem:[#allocation8 + $0x2c] sm:$0xf]
    %v399 = vld [vmem:[#allocation8 + $0x30] sm:$0xf]
    %v400 = vld [vmem:[#allocation8 + $0x34] sm:$0xf]
    %v401 = vld [vmem:[#allocation8 + $0x38] sm:$0xf]
    %v402 = vld [vmem:[#allocation8 + $0x3c] sm:$0xf]
    %v403 = vld [vmem:[#allocation8 + $0x40] sm:$0xf]
    %v404 = vld [vmem:[#allocation8 + $0x44] sm:$0xf]
    %v405 = vld [vmem:[#allocation8 + $0x48] sm:$0xf]
    %v406 = vld [vmem:[#allocation8 + $0x4c] sm:$0xf]
    %v407 = vld [vmem:[#allocation8 + $0x50] sm:$0xf]
    %v408 = vld [vmem:[#allocation8 + $0x54] sm:$0xf]
    %v409 = vld [vmem:[#allocation8 + $0x58] sm:$0xf]
    %v410 = vld [vmem:[#allocation8 + $0x5c] sm:$0xf]
    %v411 = vld [vmem:[#allocation8 + $0x60] sm:$0xf]
    %v412 = vld [vmem:[#allocation8 + $0x64] sm:$0xf]
    %v413 = vld [vmem:[#allocation8 + $0x68] sm:$0xf]
    %v414 = vld [vmem:[#allocation8 + $0x6c] sm:$0xf]
    %v415 = vld [vmem:[#allocation8 + $0x70] sm:$0xf]
    %v416 = vld [vmem:[#allocation8 + $0x74] sm:$0xf]
    %v417 = vld [vmem:[#allocation8 + $0x78] sm:$0xf]
    %v418 = vld [vmem:[#allocation8 + $0x7c] sm:$0xf]
    %v419 = vld [vmem:[%s5] sm:$0x1]
    %v421 = vlaneseq
    %v422 = vshrl.u32 %v421, 7
    %v423 = vsub.s32 0, %v422
    %v424 = vrot.slane %v419, %v423
    %v458 = vunpack.c.l.b16 %v387
    %v459 = vunpack.c.l.b16 %v388
    %v460 = vunpack.c.l.b16 %v389
    %v461 = vunpack.c.l.b16 %v390
    %v462 = vunpack.c.l.b16 %v391
    %v463 = vunpack.c.l.b16 %v392
    %v464 = vunpack.c.l.b16 %v393
    %v465 = vunpack.c.l.b16 %v394
    %v466 = vunpack.c.l.b16 %v395
    %v467 = vunpack.c.l.b16 %v396
    %v468 = vunpack.c.l.b16 %v397
    %v469 = vunpack.c.l.b16 %v398
    %v470 = vunpack.c.l.b16 %v399
    %v471 = vunpack.c.l.b16 %v400
    %v472 = vunpack.c.l.b16 %v401
    %v473 = vunpack.c.l.b16 %v402
    %v474 = vunpack.c.l.b16 %v403
    %v475 = vunpack.c.l.b16 %v404
    %v476 = vunpack.c.l.b16 %v405
    %v477 = vunpack.c.l.b16 %v406
    %v478 = vunpack.c.l.b16 %v407
    %v479 = vunpack.c.l.b16 %v408
    %v480 = vunpack.c.l.b16 %v409
    %v481 = vunpack.c.l.b16 %v410
    %v482 = vunpack.c.l.b16 %v411
    %v483 = vunpack.c.l.b16 %v412
    %v484 = vunpack.c.l.b16 %v413
    %v485 = vunpack.c.l.b16 %v414
    %v486 = vunpack.c.l.b16 %v415
    %v487 = vunpack.c.l.b16 %v416
    %v488 = vunpack.c.l.b16 %v417
    %v489 = vunpack.c.l.b16 %v418
    %v490 = vpack.c.b16 %v459, %v458
    %v491 = vpack.c.b16 %v461, %v460
    %v492 = vpack.c.b16 %v463, %v462
    %v493 = vpack.c.b16 %v465, %v464
    %v494 = vpack.c.b16 %v467, %v466
    %v495 = vpack.c.b16 %v469, %v468
    %v496 = vpack.c.b16 %v471, %v470
    %v497 = vpack.c.b16 %v473, %v472
    %v498 = vpack.c.b16 %v475, %v474
    %v499 = vpack.c.b16 %v477, %v476
    %v500 = vpack.c.b16 %v479, %v478
    %v501 = vpack.c.b16 %v481, %v480
    %v502 = vpack.c.b16 %v483, %v482
    %v503 = vpack.c.b16 %v485, %v484
    %v504 = vpack.c.b16 %v487, %v486
    %v505 = vpack.c.b16 %v489, %v488
    %522 = vmatprep.subr.bf16.mxu0 0
    %523 = vmatpush1.bf16.msra.mxu0 %v490
    %524 = vmatprep.subr.bf16.mxu0 0
    %525 = vmatpush1.bf16.msra.mxu0 %v491
    %526 = vmatprep.subr.bf16.mxu0 0
    %527 = vmatpush1.bf16.msra.mxu0 %v492
    %528 = vmatprep.subr.bf16.mxu0 0
    %529 = vmatpush1.bf16.msra.mxu0 %v493
    %530 = vmatprep.subr.bf16.mxu0 0
    %531 = vmatpush1.bf16.msra.mxu0 %v494
    %532 = vmatprep.subr.bf16.mxu0 0
    %533 = vmatpush1.bf16.msra.mxu0 %v495
    %534 = vmatprep.subr.bf16.mxu0 0
    %535 = vmatpush1.bf16.msra.mxu0 %v496
    %536 = vmatprep.subr.bf16.mxu0 0
    %537 = vmatpush1.bf16.msra.mxu0 %v497
    %538 = vmatprep.subr.bf16.mxu0 0
    %539 = vmatpush1.bf16.msra.mxu0 %v498
    %540 = vmatprep.subr.bf16.mxu0 0
    %541 = vmatpush1.bf16.msra.mxu0 %v499
    %542 = vmatprep.subr.bf16.mxu0 0
    %543 = vmatpush1.bf16.msra.mxu0 %v500
    %544 = vmatprep.subr.bf16.mxu0 0
    %545 = vmatpush1.bf16.msra.mxu0 %v501
    %546 = vmatprep.subr.bf16.mxu0 0
    %547 = vmatpush1.bf16.msra.mxu0 %v502
    %548 = vmatprep.subr.bf16.mxu0 0
    %549 = vmatpush1.bf16.msra.mxu0 %v503
    %550 = vmatprep.subr.bf16.mxu0 0
    %551 = vmatpush1.bf16.msra.mxu0 %v504
    %552 = vmatprep.subr.bf16.mxu0 0
    %553 = vmatpush1.bf16.msra.mxu0 %v505
    %554 = vmatprep.mubr.bf16.mxu0 %v386
    %555 = vmatmul.mubr.bf16.gmra.mrb[0].mxu0 %v385
    %v556 = vpop.f32.mrb[0].mxu0
    %v557 = vadd.f32 %v424, %v556
    %v558 = vpop.f32.mrb[0].mxu0
    %v559 = vpop.f32.mrb[0].mxu0
    %v560 = vpop.f32.mrb[0].mxu0
    %561 = vdwg.mxu0
    %v562 = vadd.f32 %v78, %v557
    %563 = vst [vmem:[#allocation10] sm:$0xf] %v562
    // Predicated region
    $region42: #{tpu_custom_call.1} parent=1 // pred_check
      _
    $region43: #{tpu_custom_call.1} parent=1 // pred_check_branch
      %565 = sbr.rel (0) target = $region45
    $region44: #{tpu_custom_call.1} parent=1 // pred_region
      %s567 = ssub.s32 64, 64
      %568 = vsyncadd [#allocation4], %s567
      %s570 = sshll.u32 [#allocation10], 4
      %s571 = int_to_ptr.vmem [resolvable:$true] %s570
      %573 = dma.vmem_to_hbm [thread:$0]  %s571, 64, %s6, [#allocation4]
    $region45: #{tpu_custom_call.1} parent=1 // pred_fallthru
      _
    // Predicated region
    $region46: #{tpu_custom_call.1} parent=1 // pred_check
      _
    $region47: #{tpu_custom_call.1} parent=1 // pred_check_branch
      %575 = sbr.rel (0) target = $region49
    $region48: #{tpu_custom_call.1} parent=1 // pred_region
      %576 = dma.done [#allocation4], 64
    $region49: #{tpu_custom_call.1} parent=1 // pred_fallthru
      _
    %577 = vsyncpa [#allocation3], 1
    %578 = vsyncpa [#allocation6], 1
    %579 = vsyncpa [#allocation9], 1
    %580 = vsyncpa [#allocation4], 1

</llo_original>
